<compile_context>
chip_gen: v5e
topology: v5e:2x2
jax: 0.10.0
libtpu: 0.0.40
codegen_flags: <defaults>
</compile_context>

<pallas_src>
import functools

import jax
import jax.numpy as jnp
from jax.experimental import pallas as pl
from jax.experimental.pallas import tpu as pltpu


def autopad(k, p=None, d=1):
    """Pad to 'same' shape outputs (mirrors the PyTorch helper)."""
    if d > 1:
        k = d * (k - 1) + 1 if isinstance(k, int) else [d * (x - 1) + 1 for x in k]
    if p is None:
        p = k // 2 if isinstance(k, int) else [x // 2 for x in k]
    return p


def _round_up(x, m):
    return ((x + m - 1) // m) * m


def _largest_divisor_leq(n, cap):
    cap = max(1, min(n, cap))
    for v in range(cap, 0, -1):
        if n % v == 0:
            return v
    return 1


def _vmem_limit(working_set_bytes):
    # Generous headroom, but stay inside v7x's 64 MiB physical VMEM.
    return int(min(48 * 1024 * 1024, max(16 * 1024 * 1024, 2 * working_set_bytes)))


# ----------------------------- Pallas kernels ------------------------------ #
def _pointwise_bn_silu_kernel(x_ref, w_ref, shift_ref, o_ref):
    """1x1 conv fast path: one tile of SiLU(x @ w_scaled + shift)."""
    y = jnp.dot(x_ref[...], w_ref[...], preferred_element_type=jnp.float32)
    y = y + shift_ref[...]
    o_ref[...] = (y * jax.nn.sigmoid(y)).astype(o_ref.dtype)


def _conv_bn_silu_kernel(x_ref, w_ref, shift_ref, o_ref, acc_ref, *, k, s, d, wo):
    """One grid step: NB batch images x 1 output row x 1 kernel-height tap.

    x_ref:     (NB, Wp, C1)    bf16 padded input rows at h*s + i*d
    w_ref:     (k*k, C1, C2p)  bf16 full weights (BN scale folded), VMEM-resident
    shift_ref: (1, C2p)        f32 folded BN shift
    o_ref:     (NB, Wo, C2p)   bf16 output rows
    acc_ref:   (NB*Wo, C2p)    f32 accumulator (VMEM scratch, lives across taps)
    """
    i = pl.program_id(2)                      # kernel-height tap (reduction axis)

    @pl.when(i == 0)
    def _init():
        acc_ref[...] = jnp.zeros_like(acc_ref)

    c1 = x_ref.shape[-1]
    for j in range(k):                        # static loop over kernel-width taps
        if s == 1:
            xs = x_ref[:, pl.ds(j * d, wo), :]                 # (NB, Wo, C1)
        else:
            # TODO(synk): pre-deinterleave stride phases instead of strided reads.
            xs = x_ref[:, pl.ds(j * d, wo, stride=s), :]
        # Merge (NB, Wo) into the MXU M dimension.  NB is chosen in the wrapper
        # so this reshape is a pure sublane re-label (Wo % 16 == 0) or NB == 1.
        lhs = xs.reshape(-1, c1)                               # (NB*Wo, C1)
        acc_ref[...] += jnp.dot(lhs, w_ref[i * k + j],
                                preferred_element_type=jnp.float32)

    @pl.when(i == k - 1)
    def _finalize():
        y = acc_ref[...] + shift_ref[...]                      # BN shift (f32)
        y = y * jax.nn.sigmoid(y)                              # SiLU (EUP sigmoid)
        o_ref[...] = y.astype(o_ref.dtype).reshape(o_ref.shape)


# ------------------------------ sub-wrappers -------------------------------- #
def _pointwise_conv(x, weight, inv, shift, *, s, c2p):
    """k == 1: plain tiled matmul over the flattened activation."""
    c2, c1 = weight.shape[0], weight.shape[1]
    if s > 1:
        x = x[:, ::s, ::s, :]
    N, Ho, Wo, _ = x.shape
    M = N * Ho * Wo
    TM = 256 if M >= 256 else _round_up(M, 8)
    Mp = _round_up(M, TM)
    TN = 256 if (c2p % 256 == 0) else 128

    xf = x.reshape(M, c1)
    if Mp != M:
        xf = jnp.pad(xf, ((0, Mp - M), (0, 0)))

    w = jnp.transpose(weight.reshape(c2, c1), (1, 0)).astype(jnp.float32) * inv[None, :]
    w = jnp.pad(w, ((0, 0), (0, c2p - c2))).astype(jnp.bfloat16)   # (C1, C2p)

    cost = pl.CostEstimate(
        flops=2 * Mp * c1 * c2p,
        transcendentals=Mp * c2p,
        bytes_accessed=Mp * c1 * 2 + c1 * c2p * 2 + Mp * c2p * 2)

    out = pl.pallas_call(
        _pointwise_bn_silu_kernel,
        out_shape=jax.ShapeDtypeStruct((Mp, c2p), jnp.bfloat16),
        grid_spec=pltpu.PrefetchScalarGridSpec(
            num_scalar_prefetch=0,
            grid=(Mp // TM, c2p // TN),
            in_specs=[
                pl.BlockSpec((TM, c1), lambda m, n: (m, 0)),
                pl.BlockSpec((c1, TN), lambda m, n: (0, n)),
                pl.BlockSpec((1, TN), lambda m, n: (0, n)),
            ],
            out_specs=pl.BlockSpec((TM, TN), lambda m, n: (m, n)),
        ),
        compiler_params=pltpu.CompilerParams(
            dimension_semantics=("parallel", "parallel"),
            vmem_limit_bytes=_vmem_limit(
                2 * (TM * c1 * 2 + c1 * TN * 2 + TN * 4 + TM * TN * 2)),
        ),
        cost_estimate=cost,
    )(xf, w, shift)
    return out[:M].reshape(N, Ho, Wo, c2p)


def _spatial_conv(x, weight, inv, shift, *, k, s, d, p, Ho, Wo, c2p):
    """k > 1: shifted-row conv with VMEM-resident weights and f32 accumulation."""
    N, H, W, c1 = x.shape
    c2 = weight.shape[0]
    Wp = W + 2 * p
    xp = jnp.pad(x, ((0, 0), (p, p), (p, p), (0, 0)))      # (N, Hp, Wp, C1)

    # PyTorch weight (c2, c1, kh, kw) -> (kh*kw, c1, c2p); BN scale folded in f32.
    wt = jnp.transpose(weight, (2, 3, 1, 0)).astype(jnp.float32) * inv[None, None, None, :]
    wt = wt.reshape(k * k, c1, c2)
    wt = jnp.pad(wt, ((0, 0), (0, 0), (0, c2p - c2))).astype(jnp.bfloat16)

    # Batch block: keep the f32 accumulator <= ~4 MiB; only merge batches into
    # the matmul M dimension when the (NB, Wo) merge is sublane-aligned (bf16).
    cap = max(1, (4 << 20) // (Wo * c2p * 4))
    nb = _largest_divisor_leq(N, cap) if (Wo % 16 == 0) else 1

    vmem_est = (wt.size * 2                  # resident weights
                + 2 * nb * Wp * c1 * 2       # double-buffered input rows
                + 2 * nb * Wo * c2p * 2      # double-buffered output rows
                + nb * Wo * c2p * 4          # f32 accumulator
                + 2 * c2p * 4)

    kernel = functools.partial(_conv_bn_silu_kernel, k=k, s=s, d=d, wo=Wo)
    cost = pl.CostEstimate(
        flops=2 * N * Ho * Wo * k * k * c1 * c2p,
        transcendentals=N * Ho * Wo * c2p,
        bytes_accessed=xp.size * 2 * k + wt.size * 2 + N * Ho * Wo * c2p * 2)

    out = pl.pallas_call(
        kernel,
        out_shape=jax.ShapeDtypeStruct((N, Ho, Wo, c2p), jnp.bfloat16),
        grid_spec=pltpu.PrefetchScalarGridSpec(
            num_scalar_prefetch=0,
            grid=(N // nb, Ho, k),
            in_specs=[
                # Padded NHWC input rows for kh tap i (squeezed H dim, block
                # size 1 => returned index is the element row h*s + i*d).
                pl.BlockSpec((nb, None, Wp, c1),
                             lambda b, h, i: (b, h * s + i * d, 0, 0)),
                # Full weight tensor, constant index map => DMA'd once, resident.
                pl.BlockSpec((k * k, c1, c2p), lambda b, h, i: (0, 0, 0)),
                pl.BlockSpec((1, c2p), lambda b, h, i: (0, 0)),
            ],
            out_specs=pl.BlockSpec((nb, None, Wo, c2p),
                                   lambda b, h, i: (b, h, 0, 0)),
            scratch_shapes=[pltpu.VMEM((nb * Wo, c2p), jnp.float32)],
        ),
        compiler_params=pltpu.CompilerParams(
            dimension_semantics=("parallel", "parallel", "arbitrary"),
            vmem_limit_bytes=_vmem_limit(vmem_est),
        ),
        cost_estimate=cost,
    )(xp, wt, shift)
    return out


# -------------------------------- wrapper ----------------------------------- #
@functools.partial(jax.jit, static_argnames=("k", "s", "d"))
def conv_forward(x_nchw, weight, gamma, beta, run_mean, run_var,
                 *, k=1, s=1, d=1, eps=1e-5):
    """Pallas implementation of Conv.forward: SiLU(BN(Conv2d(x)))."""
    c2, c1_w = weight.shape[0], weight.shape[1]
    N, c1, H, W = x_nchw.shape
    assert c1 == c1_w, "grouped conv (g > 1) is not supported"  # TODO(synk)
    p = autopad(k, None, d)

    Ho = (H + 2 * p - d * (k - 1) - 1) // s + 1
    Wo = (W + 2 * p - d * (k - 1) - 1) // s + 1
    c2p = _round_up(c2, 128)                  # lane-dense output channels

    # Eval-mode BN folded into per-channel scale (into weights) and shift.
    inv = gamma.astype(jnp.float32) * jax.lax.rsqrt(run_var.astype(jnp.float32) + eps)
    shift = beta.astype(jnp.float32) - run_mean.astype(jnp.float32) * inv
    shift = jnp.pad(shift, (0, c2p - c2)).reshape(1, c2p)

    # TODO(synk): a multi-layer pipeline should keep activations NHWC bf16
    # between layers; this relayout only exists for the NCHW test interface.
    x = jnp.transpose(x_nchw, (0, 2, 3, 1)).astype(jnp.bfloat16)   # (N, H, W, C1)

    if k == 1:
        out = _pointwise_conv(x, weight, inv, shift, s=s, c2p=c2p)
    else:
        out = _spatial_conv(x, weight, inv, shift, k=k, s=s, d=d, p=p,
                            Ho=Ho, Wo=Wo, c2p=c2p)

    out = out[..., :c2]                                   # drop channel padding
    return jnp.transpose(out, (0, 3, 1, 2)).astype(jnp.float32)    # back to NCHW


# ------------------------------- reference ---------------------------------- #
def _reference(x_nchw, weight, gamma, beta, run_mean, run_var,
               *, k=3, s=1, d=1, eps=1e-5):
    """Pure-JAX reference: conv + eval-mode BN + SiLU.

    BN scale is folded into the weights (mathematically identical) and the
    folded weights / activations are rounded to bf16 to match the kernel path.
    """
    p = autopad(k, None, d)
    inv = gamma / jnp.sqrt(run_var + eps)
    wf = (weight.astype(jnp.float32) * inv[:, None, None, None])
    wf = wf.astype(jnp.bfloat16).astype(jnp.float32)
    xb = x_nchw.astype(jnp.bfloat16).astype(jnp.float32)
    y = jax.lax.conv_general_dilated(
        xb, wf, window_strides=(s, s), padding=[(p, p), (p, p)],
        rhs_dilation=(d, d), dimension_numbers=("NCHW", "OIHW", "NCHW"))
    y = y + (beta - run_mean * inv).reshape(1, -1, 1, 1)
    return y * jax.nn.sigmoid(y)


# --------------------------------- main -------------------------------------- #
if __name__ == "__main__":
    key = jax.random.PRNGKey(0)
    keys = jax.random.split(key, 8)

    N, C1, H, W = 2, 4, 16, 16
    C2 = 8

    x = jax.random.normal(keys[0], (N, C1, H, W), dtype=jnp.float32)
    gamma = jax.random.uniform(keys[1], (C2,), minval=0.5, maxval=1.5)
    beta = jax.random.normal(keys[2], (C2,)) * 0.1
    run_mean = jax.random.normal(keys[3], (C2,)) * 0.1
    run_var = jax.random.uniform(keys[4], (C2,), minval=0.5, maxval=1.5)

    ok = True
    # 3x3 'same' conv (general path) and 1x1 pointwise conv (matmul fast path).
    for (K, S, D), wkey in (((3, 1, 1), keys[5]), ((1, 1, 1), keys[6])):
        weight = jax.random.normal(wkey, (C2, C1, K, K), dtype=jnp.float32) * 0.1

        out = conv_forward(x, weight, gamma, beta, run_mean, run_var, k=K, s=S, d=D)
        out = jax.block_until_ready(out)

        ref = _reference(x, weight, gamma, beta, run_mean, run_var, k=K, s=S, d=D)
        pp = autopad(K, None, D)
        Ho = (H + 2 * pp - D * (K - 1) - 1) // S + 1
        Wo = (W + 2 * pp - D * (K - 1) - 1) // S + 1
        assert out.shape == (N, C2, Ho, Wo), out.shape

        if not jnp.allclose(out, ref, atol=2e-2, rtol=2e-2):
            ok = False
            err = float(jnp.max(jnp.abs(out - ref)))
            print(f"mismatch for k={K}, s={S}, d={D}: max_err={err}")

    if ok:
        print("KERNEL_OK")
</pallas_src>

<mosaic_0001>
module attributes {stable_mosaic.version = 11 : i64} {
  func.func @_conv_bn_silu_kernel(%arg0: i32, %arg1: i32, %arg2: i32, %arg3: memref<2x1x18x4xbf16, #tpu.memory_space<vmem>>, %arg4: memref<9x4x128xbf16, #tpu.memory_space<vmem>>, %arg5: memref<1x128xf32, #tpu.memory_space<vmem>>, %arg6: memref<2x1x16x128xbf16, #tpu.memory_space<vmem>>, %arg7: memref<32x128xf32, #tpu.memory_space<vmem>>) attributes {dimension_semantics = [#tpu.dimension_semantics<parallel>, #tpu.dimension_semantics<parallel>, #tpu.dimension_semantics<arbitrary>], iteration_bounds = array<i64: 1, 16, 3>, scalar_prefetch = 0 : i64, scratch_operands = 1 : i64, tpu.core_type = #tpu.core_type<tc>, window_params = [{transform_indices = @transform_0, window_bounds = array<i64: 2, 1, 18, 4>}, {pipeline_mode = #tpu.pipeline_mode<synchronous>, transform_indices = @transform_1, window_bounds = array<i64: 9, 4, 128>}, {pipeline_mode = #tpu.pipeline_mode<synchronous>, transform_indices = @transform_2, window_bounds = array<i64: 1, 128>}, {transform_indices = @transform_3, window_bounds = array<i64: 2, 1, 16, 128>}]} {
    %c0_i32 = arith.constant 0 : i32
    %0 = arith.cmpi eq, %arg2, %c0_i32 : i32
    %1 = arith.extui %0 : i1 to i32
    %c0_i32_0 = arith.constant 0 : i32
    %2 = arith.cmpi ne, %1, %c0_i32_0 : i32
    scf.if %2 {
      %cst_35 = arith.constant 0.000000e+00 : f32
      %42 = vector.broadcast %cst_35 : f32 to vector<32x128xf32>
      %c0_36 = arith.constant 0 : index
      %c0_37 = arith.constant 0 : index
      %43 = vector.load %arg7[%c0_36, %c0_37] : memref<32x128xf32, #tpu.memory_space<vmem>>, vector<32x128xf32>
      tpu.vector_store %arg7[%c0_36, %c0_37], %42 {strides = array<i32>} : memref<32x128xf32, #tpu.memory_space<vmem>>, vector<32x128xf32>,
    } else {
    }
    %c0 = arith.constant 0 : index
    %c0_1 = arith.constant 0 : index
    %c0_2 = arith.constant 0 : index
    %c0_3 = arith.constant 0 : index
    %3 = vector.load %arg3[%c0, %c0_1, %c0_2, %c0_3] : memref<2x1x18x4xbf16, #tpu.memory_space<vmem>>, vector<2x1x16x4xbf16>
    %4 = vector.shape_cast %3 : vector<2x1x16x4xbf16> to vector<2x16x4xbf16>
    %5 = vector.shape_cast %4 : vector<2x16x4xbf16> to vector<32x4xbf16>
    %c0_4 = arith.constant 0 : index
    %c0_5 = arith.constant 0 : index
    %6 = vector.load %arg7[%c0_4, %c0_5] : memref<32x128xf32, #tpu.memory_space<vmem>>, vector<32x128xf32>
    %c3_i32 = arith.constant 3 : i32
    %7 = arith.muli %arg2, %c3_i32 : i32
    %c0_i32_6 = arith.constant 0 : i32
    %8 = arith.addi %7, %c0_i32_6 : i32
    %9 = arith.index_cast %8 : i32 to index
    %c0_7 = arith.constant 0 : index
    %c0_8 = arith.constant 0 : index
    %10 = vector.load %arg4[%9, %c0_7, %c0_8] : memref<9x4x128xbf16, #tpu.memory_space<vmem>>, vector<1x4x128xbf16>
    %11 = vector.shape_cast %10 : vector<1x4x128xbf16> to vector<4x128xbf16>
    %cst = arith.constant dense<0.000000e+00> : vector<32x128xf32>
    %12 = tpu.matmul %5, %11, %cst {dimension_numbers = #tpu.dot_dimension_numbers<[1], [0], [0], [1], [0, 0, 1, 1], [], []>} : vector<32x4xbf16>, vector<4x128xbf16>, vector<32x128xf32> -> vector<32x128xf32>
    %13 = arith.addf %6, %12 : vector<32x128xf32>
    %c0_9 = arith.constant 0 : index
    %c0_10 = arith.constant 0 : index
    %14 = vector.load %arg7[%c0_9, %c0_10] : memref<32x128xf32, #tpu.memory_space<vmem>>, vector<32x128xf32>
    tpu.vector_store %arg7[%c0_9, %c0_10], %13 {strides = array<i32>} : memref<32x128xf32, #tpu.memory_space<vmem>>, vector<32x128xf32>,
    %c0_11 = arith.constant 0 : index
    %c0_12 = arith.constant 0 : index
    %c1 = arith.constant 1 : index
    %c0_13 = arith.constant 0 : index
    %15 = vector.load %arg3[%c0_11, %c0_12, %c1, %c0_13] : memref<2x1x18x4xbf16, #tpu.memory_space<vmem>>, vector<2x1x16x4xbf16>
    %16 = vector.shape_cast %15 : vector<2x1x16x4xbf16> to vector<2x16x4xbf16>
    %17 = vector.shape_cast %16 : vector<2x16x4xbf16> to vector<32x4xbf16>
    %c0_14 = arith.constant 0 : index
    %c0_15 = arith.constant 0 : index
    %18 = vector.load %arg7[%c0_14, %c0_15] : memref<32x128xf32, #tpu.memory_space<vmem>>, vector<32x128xf32>
    %c3_i32_16 = arith.constant 3 : i32
    %19 = arith.muli %arg2, %c3_i32_16 : i32
    %c1_i32 = arith.constant 1 : i32
    %20 = arith.addi %19, %c1_i32 : i32
    %21 = arith.index_cast %20 : i32 to index
    %c0_17 = arith.constant 0 : index
    %c0_18 = arith.constant 0 : index
    %22 = vector.load %arg4[%21, %c0_17, %c0_18] : memref<9x4x128xbf16, #tpu.memory_space<vmem>>, vector<1x4x128xbf16>
    %23 = vector.shape_cast %22 : vector<1x4x128xbf16> to vector<4x128xbf16>
    %cst_19 = arith.constant dense<0.000000e+00> : vector<32x128xf32>
    %24 = tpu.matmul %17, %23, %cst_19 {dimension_numbers = #tpu.dot_dimension_numbers<[1], [0], [0], [1], [0, 0, 1, 1], [], []>} : vector<32x4xbf16>, vector<4x128xbf16>, vector<32x128xf32> -> vector<32x128xf32>
    %25 = arith.addf %18, %24 : vector<32x128xf32>
    %c0_20 = arith.constant 0 : index
    %c0_21 = arith.constant 0 : index
    %26 = vector.load %arg7[%c0_20, %c0_21] : memref<32x128xf32, #tpu.memory_space<vmem>>, vector<32x128xf32>
    tpu.vector_store %arg7[%c0_20, %c0_21], %25 {strides = array<i32>} : memref<32x128xf32, #tpu.memory_space<vmem>>, vector<32x128xf32>,
    %c0_22 = arith.constant 0 : index
    %c0_23 = arith.constant 0 : index
    %c2 = arith.constant 2 : index
    %c0_24 = arith.constant 0 : index
    %27 = vector.load %arg3[%c0_22, %c0_23, %c2, %c0_24] : memref<2x1x18x4xbf16, #tpu.memory_space<vmem>>, vector<2x1x16x4xbf16>
    %28 = vector.shape_cast %27 : vector<2x1x16x4xbf16> to vector<2x16x4xbf16>
    %29 = vector.shape_cast %28 : vector<2x16x4xbf16> to vector<32x4xbf16>
    %c0_25 = arith.constant 0 : index
    %c0_26 = arith.constant 0 : index
    %30 = vector.load %arg7[%c0_25, %c0_26] : memref<32x128xf32, #tpu.memory_space<vmem>>, vector<32x128xf32>
    %c3_i32_27 = arith.constant 3 : i32
    %31 = arith.muli %arg2, %c3_i32_27 : i32
    %c2_i32 = arith.constant 2 : i32
    %32 = arith.addi %31, %c2_i32 : i32
    %33 = arith.index_cast %32 : i32 to index
    %c0_28 = arith.constant 0 : index
    %c0_29 = arith.constant 0 : index
    %34 = vector.load %arg4[%33, %c0_28, %c0_29] : memref<9x4x128xbf16, #tpu.memory_space<vmem>>, vector<1x4x128xbf16>
    %35 = vector.shape_cast %34 : vector<1x4x128xbf16> to vector<4x128xbf16>
    %cst_30 = arith.constant dense<0.000000e+00> : vector<32x128xf32>
    %36 = tpu.matmul %29, %35, %cst_30 {dimension_numbers = #tpu.dot_dimension_numbers<[1], [0], [0], [1], [0, 0, 1, 1], [], []>} : vector<32x4xbf16>, vector<4x128xbf16>, vector<32x128xf32> -> vector<32x128xf32>
    %37 = arith.addf %30, %36 : vector<32x128xf32>
    %c0_31 = arith.constant 0 : index
    %c0_32 = arith.constant 0 : index
    %38 = vector.load %arg7[%c0_31, %c0_32] : memref<32x128xf32, #tpu.memory_space<vmem>>, vector<32x128xf32>
    tpu.vector_store %arg7[%c0_31, %c0_32], %37 {strides = array<i32>} : memref<32x128xf32, #tpu.memory_space<vmem>>, vector<32x128xf32>,
    %c2_i32_33 = arith.constant 2 : i32
    %39 = arith.cmpi eq, %arg2, %c2_i32_33 : i32
    %40 = arith.extui %39 : i1 to i32
    %c0_i32_34 = arith.constant 0 : i32
    %41 = arith.cmpi ne, %40, %c0_i32_34 : i32
    scf.if %41 {
      %c0_35 = arith.constant 0 : index
      %c0_36 = arith.constant 0 : index
      %42 = vector.load %arg7[%c0_35, %c0_36] : memref<32x128xf32, #tpu.memory_space<vmem>>, vector<32x128xf32>
      %c0_37 = arith.constant 0 : index
      %c0_38 = arith.constant 0 : index
      %43 = vector.load %arg5[%c0_37, %c0_38] : memref<1x128xf32, #tpu.memory_space<vmem>>, vector<1x128xf32>
      %44 = vector.broadcast %43 : vector<1x128xf32> to vector<32x128xf32>
      %45 = arith.addf %42, %44 : vector<32x128xf32>
      %46 = arith.negf %45 : vector<32x128xf32>
      %47 = math.exp %46 : vector<32x128xf32>
      %cst_39 = arith.constant 1.000000e+00 : f32
      %48 = vector.broadcast %cst_39 : f32 to vector<32x128xf32>
      %49 = arith.addf %48, %47 : vector<32x128xf32>
      %50 = arith.divf %48, %49 : vector<32x128xf32>
      %51 = arith.mulf %45, %50 : vector<32x128xf32>
      %52 = arith.truncf %51 : vector<32x128xf32> to vector<32x128xbf16>
      %53 = vector.shape_cast %52 : vector<32x128xbf16> to vector<2x16x128xbf16>
      %c0_40 = arith.constant 0 : index
      %c0_41 = arith.constant 0 : index
      %c0_42 = arith.constant 0 : index
      %c0_43 = arith.constant 0 : index
      %54 = vector.load %arg6[%c0_40, %c0_41, %c0_42, %c0_43] : memref<2x1x16x128xbf16, #tpu.memory_space<vmem>>, vector<2x1x16x128xbf16>
      %55 = vector.shape_cast %54 : vector<2x1x16x128xbf16> to vector<2x16x128xbf16>
      %56 = vector.shape_cast %53 : vector<2x16x128xbf16> to vector<2x1x16x128xbf16>
      tpu.vector_store %arg6[%c0_40, %c0_41, %c0_42, %c0_43], %56 {strides = array<i32>} : memref<2x1x16x128xbf16, #tpu.memory_space<vmem>>, vector<2x1x16x128xbf16>,
    } else {
    }
    return
  }
  func.func @transform_0(%arg0: i32, %arg1: i32, %arg2: i32) -> (i32, i32, i32, i32) {
    %c1_i32 = arith.constant 1 : i32
    %0 = arith.muli %arg1, %c1_i32 : i32
    %c1_i32_0 = arith.constant 1 : i32
    %1 = arith.muli %arg2, %c1_i32_0 : i32
    %2 = arith.addi %0, %1 : i32
    %c0_i32 = arith.constant 0 : i32
    %c0_i32_1 = arith.constant 0 : i32
    %c0_i32_2 = arith.constant 0 : i32
    return %arg0, %2, %c0_i32, %c0_i32_1 : i32, i32, i32, i32
  }
  func.func @transform_1(%arg0: i32, %arg1: i32, %arg2: i32) -> (i32, i32, i32) {
    %c0_i32 = arith.constant 0 : i32
    %c0_i32_0 = arith.constant 0 : i32
    %c0_i32_1 = arith.constant 0 : i32
    %c0_i32_2 = arith.constant 0 : i32
    return %c0_i32, %c0_i32_0, %c0_i32_1 : i32, i32, i32
  }
  func.func @transform_2(%arg0: i32, %arg1: i32, %arg2: i32) -> (i32, i32) {
    %c0_i32 = arith.constant 0 : i32
    %c0_i32_0 = arith.constant 0 : i32
    %c0_i32_1 = arith.constant 0 : i32
    return %c0_i32, %c0_i32_0 : i32, i32
  }
  func.func @transform_3(%arg0: i32, %arg1: i32, %arg2: i32) -> (i32, i32, i32, i32) {
    %c0_i32 = arith.constant 0 : i32
    %c0_i32_0 = arith.constant 0 : i32
    %c0_i32_1 = arith.constant 0 : i32
    return %arg0, %arg1, %c0_i32, %c0_i32_0 : i32, i32, i32, i32
  }
}

</mosaic_0001>

<llo_original>
// kernel: conv_forward.1
$region0: #{conv_forward.1}
  #allocation0 [shape = 'u32[]', space=smem, size = 0x4, offset = 0x4, fixed_abs, tag = 'smem constant byte address 0x4 - core index']
  #allocation1 [shape = 'u32[72,128]{1,0:T(1,128)}', space=vmem, size = 0x9000, scoped, tag = 'internal scratch']
  #allocation2 [shape = 'f32[32,128]{1,0:T(8,128)}', space=vmem, size = 0x4000, scoped, tag = 'scratch operand']
  %s0 = inlined_call_operand.vmem [shape: bf16[2,18,18,4], index: 0, kind: input, shape index: {}]
  %s1 = inlined_call_operand.vmem [shape: bf16[9,4,128], index: 1, kind: input, shape index: {}]
  %s2 = inlined_call_operand.vmem [shape: f32[1,128], index: 2, kind: input, shape index: {}]
  %s3 = inlined_call_operand.vmem [shape: bf16[2,16,16,128], index: 3, kind: output, shape index: {}]
  %s4 = sld [smem:[#allocation0]]
  $region131: #{conv_forward.1} parent=0
    _
  %s6 = ssub.s32 1, %s4
  %s7 = scalar_select 0, %s6, %s4
  $region1: #{conv_forward.1} parent=0
    #allocation3 [shape = 'u8[24576]{0}', space=vmem, size = 0x6000, scoped, tag = 'input window, operand 0']
    #allocation4 [shape = 'u8[16384]{0}', space=vmem, size = 0x4000, scoped, tag = 'output window, operand 0']
    loop: start=0, step=1, limit=50
    $region2: #{conv_forward.1} parent=1 // loop_pre_header
      _
    $region3: #{conv_forward.1} parent=1 // loop_header
      %s9 = sphi 0, %s13
      %p10 = scmp.ge.s32.totalorder %s9, 50
      %s16 = sphi 0, %s35
      %s17 = sphi 0, %s31
      %s18 = sphi 0, %s27
      %s19 = sphi 0, %s16
      %s20 = sphi 0, %s17
      %s21 = sphi 0, %s18
      %s22 = sphi 0, %s19
      %s23 = sphi 0, %s20
      %s24 = sphi 0, %s21
      %s42 = sphi 0, %s44
      %s45 = sphi 0, %s42
      %s46 = sphi 0, %s45
      %s62 = sphi 0, %s46
      %s66 = sphi 0, %s66
      %s68 = sphi 0, %s66
      %s69 = sphi 0, %s68
      %s83 = sphi 0, %s69
      %s87 = sphi 0, %s87
      %s89 = sphi 0, %s87
      %s90 = sphi 0, %s89
      %s104 = sphi 0, %s90
      %s112 = sphi 0, %s114
      %s115 = sphi 0, %s112
      %s116 = sphi 0, %s115
      %s132 = sphi 0, %s116
    $region4: #{conv_forward.1} parent=1 // loop_header_branch
      %12 = sbr.rel (%p10) target = $region8
    $region5: #{conv_forward.1} parent=1 // loop_body
      %s14 = ssub.s32 %s9, 1
      %s15 = ssub.s32 %s9, 2
      %s25 = sadd.s32 1, %s18
      %p26 = scmp.ge.s32.totalorder %s25, 3
      %s27 = scalar_select %p26, 0, %s25
      %s28 = sadd.s32 1, %s17
      %s29 = scalar_select %p26, %s28, %s17
      %p30 = scmp.ge.s32.totalorder %s29, 16
      %s31 = scalar_select %p30, 0, %s29
      %s32 = sadd.s32 1, %s16
      %s33 = scalar_select %p30, %s32, %s16
      %p34 = scmp.ge.s32.totalorder %s33, 1
      %s35 = scalar_select %p34, 0, %s33
      %s36 = sadd.s32 %s17, %s18
      %s37 = sadd.s32 %s31, %s27
      %s38 = ssub.s32 %s16, %s35
      %s39 = ssub.s32 %s36, %s37
      %s40 = sor.u32 %s38, %s39
      %p41 = scmp.eq.s32.totalorder %s40, 0
      %s43 = sadd.s32 %s42, 1
      %s44 = scalar_select %p41, %s42, %s43
      %p47 = pneg %p41
      %p48 = scmp.eq.s32.totalorder %s9, 47
      %p49 = por %p47, %p48
      %p50 = scmp.ne.s32.totalorder %s42, %s45
      %p51 = scmp.eq.s32.totalorder %s9, 0
      %p52 = por %p50, %p51
      %p53 = scmp.ne.s32.totalorder %s42, %s45
      %p54 = scmp.eq.s32.totalorder %s14, 47
      %p55 = por %p53, %p54
      %p56 = scmp.ne.s32.totalorder %s45, %s46
      %p57 = scmp.eq.s32.totalorder %s14, 0
      %p58 = por %p56, %p57
      %p59 = scmp.ne.s32.totalorder %s45, %s46
      %p60 = scmp.eq.s32.totalorder %s15, 47
      %p61 = por %p59, %p60
      %p63 = scmp.ne.s32.totalorder %s46, %s62
      %p64 = scmp.eq.s32.totalorder %s15, 0
      %p65 = por %p63, %p64
      %s67 = sadd.s32 %s66, 1
      %p70 = scmp.eq.s32.totalorder %s9, 47
      %p71 = scmp.ne.s32.totalorder %s66, %s68
      %p72 = scmp.eq.s32.totalorder %s9, 0
      %p73 = por %p71, %p72
      %p74 = scmp.ne.s32.totalorder %s66, %s68
      %p75 = scmp.eq.s32.totalorder %s14, 47
      %p76 = por %p74, %p75
      %p77 = scmp.ne.s32.totalorder %s68, %s69
      %p78 = scmp.eq.s32.totalorder %s14, 0
      %p79 = por %p77, %p78
      %p80 = scmp.ne.s32.totalorder %s68, %s69
      %p81 = scmp.eq.s32.totalorder %s15, 47
      %p82 = por %p80, %p81
      %p84 = scmp.ne.s32.totalorder %s69, %s83
      %p85 = scmp.eq.s32.totalorder %s15, 0
      %p86 = por %p84, %p85
      %s88 = sadd.s32 %s87, 1
      %p91 = scmp.eq.s32.totalorder %s9, 47
      %p92 = scmp.ne.s32.totalorder %s87, %s89
      %p93 = scmp.eq.s32.totalorder %s9, 0
      %p94 = por %p92, %p93
      %p95 = scmp.ne.s32.totalorder %s87, %s89
      %p96 = scmp.eq.s32.totalorder %s14, 47
      %p97 = por %p95, %p96
      %p98 = scmp.ne.s32.totalorder %s89, %s90
      %p99 = scmp.eq.s32.totalorder %s14, 0
      %p100 = por %p98, %p99
      %p101 = scmp.ne.s32.totalorder %s89, %s90
      %p102 = scmp.eq.s32.totalorder %s15, 47
      %p103 = por %p101, %p102
      %p105 = scmp.ne.s32.totalorder %s90, %s104
      %p106 = scmp.eq.s32.totalorder %s15, 0
      %p107 = por %p105, %p106
      %s108 = ssub.s32 %s16, %s35
      %s109 = ssub.s32 %s17, %s31
      %s110 = sor.u32 %s108, %s109
      %p111 = scmp.eq.s32.totalorder %s110, 0
      %s113 = sadd.s32 %s112, 1
      %s114 = scalar_select %p111, %s112, %s113
      %p117 = pneg %p111
      %p118 = scmp.eq.s32.totalorder %s9, 47
      %p119 = por %p117, %p118
      %p120 = scmp.ne.s32.totalorder %s112, %s115
      %p121 = scmp.eq.s32.totalorder %s9, 0
      %p122 = por %p120, %p121
      %p123 = scmp.ne.s32.totalorder %s112, %s115
      %p124 = scmp.eq.s32.totalorder %s14, 47
      %p125 = por %p123, %p124
      %p126 = scmp.ne.s32.totalorder %s115, %s116
      %p127 = scmp.eq.s32.totalorder %s14, 0
      %p128 = por %p126, %p127
      %p129 = scmp.ne.s32.totalorder %s115, %s116
      %p130 = scmp.eq.s32.totalorder %s15, 47
      %p131 = por %p129, %p130
      %p133 = scmp.ne.s32.totalorder %s116, %s132
      %p134 = scmp.eq.s32.totalorder %s15, 0
      %p135 = por %p133, %p134
      %p136 = scmp.le.s32.totalorder 1, %s9
      %p137 = scmp.lt.s32.totalorder %s9, 49
      %p138 = pnand %p136, %p137
      %p139 = pneg %p138
      // Predicated region
      $region9: #{conv_forward.1} parent=5 // pred_check
        _
      $region10: #{conv_forward.1} parent=5 // pred_check_branch
        %141 = sbr.rel (%p138) target = $region12
      $region11: #{conv_forward.1} parent=5 // pred_region
        %s142 = ssub.s32 %s9, 1
        // Predicated region
        $region13: #{conv_forward.1} parent=11 // pred_check
          %p143 = pneg %p79
        $region14: #{conv_forward.1} parent=11 // pred_check_branch
          %145 = sbr.rel (%p143) target = $region16
        $region15: #{conv_forward.1} parent=11 // pred_region
          _
        $region16: #{conv_forward.1} parent=11 // pred_fallthru
          _
        // Predicated region
        $region17: #{conv_forward.1} parent=11 // pred_check
          %p146 = pneg %p100
        $region18: #{conv_forward.1} parent=11 // pred_check_branch
          %148 = sbr.rel (%p146) target = $region20
        $region19: #{conv_forward.1} parent=11 // pred_region
          _
        $region20: #{conv_forward.1} parent=11 // pred_fallthru
          _
      $region12: #{conv_forward.1} parent=5 // pred_fallthru
        _
      %p149 = scmp.lt.s32.totalorder %s9, 48
      // Predicated region
      $region21: #{conv_forward.1} parent=5 // pred_check
        %p150 = pneg %p149
      $region22: #{conv_forward.1} parent=5 // pred_check_branch
        %152 = sbr.rel (%p150) target = $region24
      $region23: #{conv_forward.1} parent=5 // pred_region
        // Predicated region
        $region25: #{conv_forward.1} parent=23 // pred_check
          %p153 = pneg %p52
        $region26: #{conv_forward.1} parent=23 // pred_check_branch
          %155 = sbr.rel (%p153) target = $region28
        $region27: #{conv_forward.1} parent=23 // pred_region
          %s156 = sand.u32 %s42, 1
          %s157 = sand.u32 %s42, 1
          %s158 = smul.addr %s157, 24
          %s159 = scalar_lea.vmem [#allocation3], %s158
          %s160 = sadd.s32 %s17, %s18
          %s161 = smul.u32 2, %s16
          %s162 = smul.addr %s160, 3
          %s163 = smul.addr %s161, 54
          %s164 = sadd.s32 %s162, %s163
          %s165 = smul.addr %s164, 4
          %s166 = scalar_lea.vmem %s0, %s165
          // Predicated region
          $region29: #{conv_forward.1} parent=27 // pred_check
            _
          $region30: #{conv_forward.1} parent=27 // pred_check_branch
            %168 = sbr.rel (0) target = $region32
          $region31: #{conv_forward.1} parent=27 // pred_region
            // Predicated region
            $region33: #{conv_forward.1} parent=31 // pred_check
              _
            $region34: #{conv_forward.1} parent=31 // pred_check_branch
              %170 = sbr.rel target = $region36
            $region35: #{conv_forward.1} parent=31 // pred_region
              // Predicated region
              $region48: #{conv_forward.1} parent=35 // pred_check
                _
              $region49: #{conv_forward.1} parent=35 // pred_check_branch
                %196 = sbr.rel (0) target = $region51
              $region50: #{conv_forward.1} parent=35 // pred_region
                loop: start=0, step=1, limit=1
                $region52: #{conv_forward.1} parent=50 // loop_pre_header
                  _
                $region53: #{conv_forward.1} parent=50 // loop_header
                  %s198 = sphi 0, %s202
                  %p199 = scmp.ge.s32.totalorder %s198, 1
                  %s203 = sphi %s166, %s166
                  %s204 = sphi %s159, %s159
                $region54: #{conv_forward.1} parent=50 // loop_header_branch
                  %201 = sbr.rel (%p199) target = $region58
                $region55: #{conv_forward.1} parent=50 // loop_body
                  _
                $region56: #{conv_forward.1} parent=50 // loop_footer
                  %s202 = sadd.s32 1, %s198
                $region57: #{conv_forward.1} parent=50 // loop_footer_branch
                  %197 = sbr.rel target = $region53
                $region58: #{conv_forward.1} parent=50 // loop_exit
                  _
                %s206 = ssub.s32 16, 1
                loop: start=0, step=1, limit=1
                $region59: #{conv_forward.1} parent=50 // loop_pre_header
                  _
                $region60: #{conv_forward.1} parent=50 // loop_header
                  %s208 = sphi 0, %s212
                  %p209 = scmp.ge.s32.totalorder %s208, 1
                  %s213 = sphi %s166, %s166
                  %s214 = sphi %s159, %s159
                $region61: #{conv_forward.1} parent=50 // loop_header_branch
                  %211 = sbr.rel (%p209) target = $region65
                $region62: #{conv_forward.1} parent=50 // loop_body
                  %v215 = vld [vmem:[%s213] sm:%s206]
                  %216 = vst [vmem:[%s214] sm:%s206] %v215
                  %v217 = vld [vmem:[%s213 + $0x4] sm:%s206]
                  %218 = vst [vmem:[%s214 + $0x4] sm:%s206] %v217
                  %v219 = vld [vmem:[%s213 + $0x8] sm:%s206]
                  %220 = vst [vmem:[%s214 + $0x8] sm:%s206] %v219
                  %v221 = vld [vmem:[%s213 + $0xd8] sm:%s206]
                  %222 = vst [vmem:[%s214 + $0xc] sm:%s206] %v221
                  %v223 = vld [vmem:[%s213 + $0xdc] sm:%s206]
                  %224 = vst [vmem:[%s214 + $0x10] sm:%s206] %v223
                  %v225 = vld [vmem:[%s213 + $0xe0] sm:%s206]
                  %226 = vst [vmem:[%s214 + $0x14] sm:%s206] %v225
                $region63: #{conv_forward.1} parent=50 // loop_footer
                  %s212 = sadd.s32 1, %s208
                $region64: #{conv_forward.1} parent=50 // loop_footer_branch
                  %207 = sbr.rel target = $region60
                $region65: #{conv_forward.1} parent=50 // loop_exit
                  _
              $region51: #{conv_forward.1} parent=35 // pred_fallthru
                _
            $region36: #{conv_forward.1} parent=31 // pred_fallthru
              _
            // Predicated region
            $region37: #{conv_forward.1} parent=31 // pred_check
              _
            $region38: #{conv_forward.1} parent=31 // pred_check_branch
              %172 = sbr.rel (0) target = $region40
            $region39: #{conv_forward.1} parent=31 // pred_region
              %s174 = ssub.s32 16, 1
              loop: start=0, step=1, limit=1
              $region41: #{conv_forward.1} parent=39 // loop_pre_header
                _
              $region42: #{conv_forward.1} parent=39 // loop_header
                %s176 = sphi 0, %s180
                %p177 = scmp.ge.s32.totalorder %s176, 1
                %s181 = sphi %s166, %s166
                %s182 = sphi %s159, %s159
              $region43: #{conv_forward.1} parent=39 // loop_header_branch
                %179 = sbr.rel (%p177) target = $region47
              $region44: #{conv_forward.1} parent=39 // loop_body
                %v183 = vld [vmem:[%s181] sm:%s174]
                %184 = vst [vmem:[%s182] sm:%s174] %v183
                %v185 = vld [vmem:[%s181 + $0x4] sm:%s174]
                %186 = vst [vmem:[%s182 + $0x4] sm:%s174] %v185
                %v187 = vld [vmem:[%s181 + $0x8] sm:%s174]
                %188 = vst [vmem:[%s182 + $0x8] sm:%s174] %v187
                %v189 = vld [vmem:[%s181 + $0xd8] sm:%s174]
                %190 = vst [vmem:[%s182 + $0xc] sm:%s174] %v189
                %v191 = vld [vmem:[%s181 + $0xdc] sm:%s174]
                %192 = vst [vmem:[%s182 + $0x10] sm:%s174] %v191
                %v193 = vld [vmem:[%s181 + $0xe0] sm:%s174]
                %194 = vst [vmem:[%s182 + $0x14] sm:%s174] %v193
              $region45: #{conv_forward.1} parent=39 // loop_footer
                %s180 = sadd.s32 1, %s176
              $region46: #{conv_forward.1} parent=39 // loop_footer_branch
                %175 = sbr.rel target = $region42
              $region47: #{conv_forward.1} parent=39 // loop_exit
                _
            $region40: #{conv_forward.1} parent=31 // pred_fallthru
              _
          $region32: #{conv_forward.1} parent=27 // pred_fallthru
            _
          %227 = vnop
        $region28: #{conv_forward.1} parent=23 // pred_fallthru
          _
      $region24: #{conv_forward.1} parent=5 // pred_fallthru
        _
      %p228 = scmp.le.s32.totalorder 1, %s9
      %p229 = scmp.lt.s32.totalorder %s9, 49
      %p230 = pnand %p228, %p229
      %p231 = pneg %p230
      // Predicated region
      $region66: #{conv_forward.1} parent=5 // pred_check
        _
      $region67: #{conv_forward.1} parent=5 // pred_check_branch
        %233 = sbr.rel (%p230) target = $region69
      $region68: #{conv_forward.1} parent=5 // pred_region
        %s234 = ssub.s32 %s9, 1
        %s235 = sand.u32 %s45, 1
        %s236 = sand.u32 %s45, 1
        %s237 = smul.addr %s236, 24
        %s238 = scalar_lea.vmem [#allocation3], %s237
        // Predicated region
        $region70: #{conv_forward.1} parent=68 // pred_check
          %p239 = pneg %p58
        $region71: #{conv_forward.1} parent=68 // pred_check_branch
          %241 = sbr.rel (%p239) target = $region73
        $region72: #{conv_forward.1} parent=68 // pred_region
          _
        $region73: #{conv_forward.1} parent=68 // pred_fallthru
          _
        %s242 = sand.u32 %s45, 1
        %s243 = sand.u32 %s45, 1
        %s244 = smul.addr %s243, 24
        %s245 = scalar_lea.vmem [#allocation3], %s244
        %p246 = pneg %p58
        %p247 = pneg %p55
        %p248 = pneg %p79
        %p249 = pneg %p76
        %p250 = pneg %p100
        %p251 = pneg %p97
        %p252 = pneg %p128
        %p253 = pneg %p125
        %s254 = sand.u32 %s115, 1
        %s255 = sand.u32 %s115, 1
        %s256 = smul.addr %s255, 16
        %s257 = scalar_lea.vmem [#allocation4], %s256
        %s258 = sadd.s32 %s20, %s21
        %s259 = smul.u32 2, %s19
        %s260 = smul.u32 2, %s19
        %p262 = scmp.eq.s32.totalorder %s21, 0
        // Predicated region
        $region74: #{conv_forward.1} parent=68 // pred_check
          %p263 = pneg %p262
        $region75: #{conv_forward.1} parent=68 // pred_check_branch
          %265 = sbr.rel (%p263) target = $region77
        $region76: #{conv_forward.1} parent=68 // pred_region
          %266 = vst [vmem:[#allocation2] sm:$0xff] 0.0
          %267 = vst [vmem:[#allocation2 + $0x8] sm:$0xff] 0.0
          %268 = vst [vmem:[#allocation2 + $0x10] sm:$0xff] 0.0
          %269 = vst [vmem:[#allocation2 + $0x18] sm:$0xff] 0.0
        $region77: #{conv_forward.1} parent=68 // pred_fallthru
          _
        %v270 = vld [vmem:[%s238] sm:$0xf]
        %v271 = vld [vmem:[%s238 + $0x4] sm:$0xf]
        %v272 = vld [vmem:[%s238 + $0xc] sm:$0xf]
        %v273 = vld [vmem:[%s238 + $0x10] sm:$0xf]
        %v274 = vld [vmem:[#allocation2] sm:$0xff]
        %v275 = vld [vmem:[#allocation2 + $0x8] sm:$0xff]
        %v276 = vld [vmem:[#allocation2 + $0x10] sm:$0xff]
        %v277 = vld [vmem:[#allocation2 + $0x18] sm:$0xff]
        %s278 = smul.u32 %s21, 3
        %s279 = smul.addr %s278, 2
        %s280 = scalar_lea.vmem %s1, %s279
        %v281 = vld [vmem:[%s280] sm:$0x3]
        %v286 = vunpack.c.l.b16 %v270
        %v287 = vunpack.c.l.b16 %v271
        %v288 = vunpack.c.l.b16 %v272
        %v289 = vunpack.c.l.b16 %v273
        %v290 = vpack.c.b16 %v287, %v286
        %v291 = vpack.c.b16 %v289, %v288
        %vm292 = vcmask 31744
        %v294 = vsel %vm292, %v290, 0
        %v297 = vsel %vm292, %v291, 0
        %vm299 = vcmask 1041408
        %v301 = vsel %vm299, %v281, 0
        %303 = vmatpush.bf16.msra.mxu0 0
        %304 = vmatpush.bf16.msra.mxu0 0
        %305 = vmatpush.bf16.msra.mxu0 0
        %306 = vmatpush.bf16.msra.mxu0 0
        %307 = vmatpush.bf16.msra.mxu0 0
        %308 = vmatpush.bf16.msra.mxu0 0
        %309 = vmatpush.bf16.msra.mxu0 0
        %310 = vmatpush.bf16.msra.mxu0 %v301
        %311 = vmatmul.bf16.gmra.mxu0 %v294
        %v312 = vpop.f32.mrf.mxu0
        %v313 = vadd.f32 0.0, %v312
        %v314 = vpop.f32.mrf.mxu0
        %v315 = vadd.f32 0.0, %v314
        %316 = vmatmul.bf16.gmra.mxu0 %v297
        %v317 = vpop.f32.mrf.mxu0
        %v318 = vadd.f32 0.0, %v317
        %v319 = vpop.f32.mrf.mxu0
        %v320 = vadd.f32 0.0, %v319
        %321 = vdwg.mxu0
        %v322 = vadd.f32 %v274, %v313
        %v323 = vadd.f32 %v275, %v315
        %v324 = vadd.f32 %v276, %v318
        %v325 = vadd.f32 %v277, %v320
        %326 = vst [vmem:[#allocation2] sm:$0xff] %v322
        %327 = vst [vmem:[#allocation2 + $0x8] sm:$0xff] %v323
        %328 = vst [vmem:[#allocation2 + $0x10] sm:$0xff] %v324
        %329 = vst [vmem:[#allocation2 + $0x18] sm:$0xff] %v325
        %v330 = vld [vmem:[%s238] sm:$0xf]
        %v331 = vld [vmem:[%s238 + $0x4] sm:$0xf]
        %v332 = vld [vmem:[%s238 + $0x8] sm:$0x1]
        %v333 = vld [vmem:[%s238 + $0xc] sm:$0xf]
        %v334 = vld [vmem:[%s238 + $0x10] sm:$0xf]
        %v335 = vld [vmem:[%s238 + $0x14] sm:$0x1]
        %vm336 = vsmask.f32 3328
        %vm337 = vsmask.f32 7440
        %vm338 = vmor %vm336, %vm337
        %v340 = vshrl.u32 %v330, 16
        %v342 = vrot.slane %v340, 4
        %v343 = vshll.u32 %v330, 16
        %v345 = vrot.slane %v343, 5
        %v346 = vor.u32 %v342, %v345
        %v347 = vrot.slane %v346, 4
        %v349 = vshll.u32 %v331, 16
        %v351 = vrot.slane %v349, 5
        %v352 = vsel %vm338, %v347, %v351
        %v353 = vshrl.u32 %v331, 16
        %v355 = vrot.slane %v353, 4
        %v356 = vor.u32 %v355, %v351
        %v357 = vrot.slane %v356, 4
        %v359 = vshll.u32 %v332, 16
        %v361 = vrot.slane %v359, 5
        %v362 = vsel %vm338, %v357, %v361
        %v364 = vshrl.u32 %v333, 16
        %v366 = vrot.slane %v364, 4
        %v367 = vshll.u32 %v333, 16
        %v369 = vrot.slane %v367, 5
        %v370 = vor.u32 %v366, %v369
        %v371 = vrot.slane %v370, 4
        %v373 = vshll.u32 %v334, 16
        %v375 = vrot.slane %v373, 5
        %v376 = vsel %vm338, %v371, %v375
        %v377 = vshrl.u32 %v334, 16
        %v379 = vrot.slane %v377, 4
        %v380 = vor.u32 %v379, %v375
        %v381 = vrot.slane %v380, 4
        %v383 = vshll.u32 %v335, 16
        %v385 = vrot.slane %v383, 5
        %v386 = vsel %vm338, %v381, %v385
        %v387 = vld [vmem:[#allocation2] sm:$0xff]
        %v388 = vld [vmem:[#allocation2 + $0x8] sm:$0xff]
        %v389 = vld [vmem:[#allocation2 + $0x10] sm:$0xff]
        %v390 = vld [vmem:[#allocation2 + $0x18] sm:$0xff]
        %s391 = sadd.s32 %s278, 1
        %s392 = smul.addr %s391, 2
        %s393 = scalar_lea.vmem %s1, %s392
        %v394 = vld [vmem:[%s393] sm:$0x3]
        %v395 = vunpack.c.l.b16 %v352
        %v396 = vunpack.c.l.b16 %v362
        %v397 = vunpack.c.l.b16 %v376
        %v398 = vunpack.c.l.b16 %v386
        %v399 = vpack.c.b16 %v396, %v395
        %v400 = vpack.c.b16 %v398, %v397
        %v402 = vsel %vm292, %v399, 0
        %v405 = vsel %vm292, %v400, 0
        %v408 = vsel %vm299, %v394, 0
        %410 = vmatpush.bf16.msra.mxu0 0
        %411 = vmatpush.bf16.msra.mxu0 0
        %412 = vmatpush.bf16.msra.mxu0 0
        %413 = vmatpush.bf16.msra.mxu0 0
        %414 = vmatpush.bf16.msra.mxu0 0
        %415 = vmatpush.bf16.msra.mxu0 0
        %416 = vmatpush.bf16.msra.mxu0 0
        %417 = vmatpush.bf16.msra.mxu0 %v408
        %418 = vmatmul.bf16.gmra.mxu0 %v402
        %v419 = vpop.f32.mrf.mxu0
        %v420 = vadd.f32 0.0, %v419
        %v421 = vpop.f32.mrf.mxu0
        %v422 = vadd.f32 0.0, %v421
        %423 = vmatmul.bf16.gmra.mxu0 %v405
        %v424 = vpop.f32.mrf.mxu0
        %v425 = vadd.f32 0.0, %v424
        %v426 = vpop.f32.mrf.mxu0
        %v427 = vadd.f32 0.0, %v426
        %428 = vdwg.mxu0
        %v429 = vadd.f32 %v387, %v420
        %v430 = vadd.f32 %v388, %v422
        %v431 = vadd.f32 %v389, %v425
        %v432 = vadd.f32 %v390, %v427
        %433 = vst [vmem:[#allocation2] sm:$0xff] %v429
        %434 = vst [vmem:[#allocation2 + $0x8] sm:$0xff] %v430
        %435 = vst [vmem:[#allocation2 + $0x10] sm:$0xff] %v431
        %436 = vst [vmem:[#allocation2 + $0x18] sm:$0xff] %v432
        %v437 = vld [vmem:[%s238] sm:$0xe]
        %v438 = vld [vmem:[%s238 + $0x4] sm:$0xf]
        %v439 = vld [vmem:[%s238 + $0x8] sm:$0x1]
        %v440 = vld [vmem:[%s238 + $0xc] sm:$0xe]
        %v441 = vld [vmem:[%s238 + $0x10] sm:$0xf]
        %v442 = vld [vmem:[%s238 + $0x14] sm:$0x1]
        %vm449 = vcmask 1042432
        %vm450 = vcmask 1046532
        %vm451 = vmor %vm449, %vm450
        %v452 = vrot.slane %v437, 5
        %v453 = vrot.slane %v452, 4
        %v454 = vrot.slane %v438, 5
        %v455 = vsel %vm451, %v453, %v454
        %v456 = vrot.slane %v454, 4
        %v457 = vrot.slane %v439, 5
        %v458 = vsel %vm451, %v456, %v457
        %v459 = vrot.slane %v440, 5
        %v460 = vrot.slane %v459, 4
        %v461 = vrot.slane %v441, 5
        %v462 = vsel %vm451, %v460, %v461
        %v463 = vrot.slane %v461, 4
        %v464 = vrot.slane %v442, 5
        %v465 = vsel %vm451, %v463, %v464
        %v466 = vld [vmem:[#allocation2] sm:$0xff]
        %v467 = vld [vmem:[#allocation2 + $0x8] sm:$0xff]
        %v468 = vld [vmem:[#allocation2 + $0x10] sm:$0xff]
        %v469 = vld [vmem:[#allocation2 + $0x18] sm:$0xff]
        %s470 = sadd.s32 %s278, 2
        %s471 = smul.addr %s470, 2
        %s472 = scalar_lea.vmem %s1, %s471
        %v473 = vld [vmem:[%s472] sm:$0x3]
        %v474 = vunpack.c.l.b16 %v455
        %v475 = vunpack.c.l.b16 %v458
        %v476 = vunpack.c.l.b16 %v462
        %v477 = vunpack.c.l.b16 %v465
        %v478 = vpack.c.b16 %v475, %v474
        %v479 = vpack.c.b16 %v477, %v476
        %v481 = vsel %vm292, %v478, 0
        %v484 = vsel %vm292, %v479, 0
        %v487 = vsel %vm299, %v473, 0
        %489 = vmatpush.bf16.msra.mxu0 0
        %490 = vmatpush.bf16.msra.mxu0 0
        %491 = vmatpush.bf16.msra.mxu0 0
        %492 = vmatpush.bf16.msra.mxu0 0
        %493 = vmatpush.bf16.msra.mxu0 0
        %494 = vmatpush.bf16.msra.mxu0 0
        %495 = vmatpush.bf16.msra.mxu0 0
        %496 = vmatpush.bf16.msra.mxu0 %v487
        %497 = vmatmul.bf16.gmra.mxu0 %v481
        %v498 = vpop.f32.mrf.mxu0
        %v499 = vadd.f32 0.0, %v498
        %v500 = vpop.f32.mrf.mxu0
        %v501 = vadd.f32 0.0, %v500
        %502 = vmatmul.bf16.gmra.mxu0 %v484
        %v503 = vpop.f32.mrf.mxu0
        %v504 = vadd.f32 0.0, %v503
        %v505 = vpop.f32.mrf.mxu0
        %v506 = vadd.f32 0.0, %v505
        %507 = vdwg.mxu0
        %v508 = vadd.f32 %v466, %v499
        %v509 = vadd.f32 %v467, %v501
        %v510 = vadd.f32 %v468, %v504
        %v511 = vadd.f32 %v469, %v506
        %512 = vst [vmem:[#allocation2] sm:$0xff] %v508
        %513 = vst [vmem:[#allocation2 + $0x8] sm:$0xff] %v509
        %514 = vst [vmem:[#allocation2 + $0x10] sm:$0xff] %v510
        %515 = vst [vmem:[#allocation2 + $0x18] sm:$0xff] %v511
        %p516 = scmp.eq.s32.totalorder %s21, 2
        // Predicated region
        $region78: #{conv_forward.1} parent=68 // pred_check
          %p517 = pneg %p516
        $region79: #{conv_forward.1} parent=68 // pred_check_branch
          %519 = sbr.rel (%p517) target = $region81
        $region80: #{conv_forward.1} parent=68 // pred_region
          %v520 = vld [vmem:[#allocation2] sm:$0xff]
          %v521 = vld [vmem:[#allocation2 + $0x8] sm:$0xff]
          %v522 = vld [vmem:[#allocation2 + $0x10] sm:$0xff]
          %v523 = vld [vmem:[#allocation2 + $0x18] sm:$0xff]
          %v524 = vld [vmem:[%s2] sm:$0x1]
          %v526 = vperm.slane %v524, 0
          %v528 = vadd.f32 %v520, %v526
          %v529 = vadd.f32 %v521, %v526
          %v530 = vadd.f32 %v522, %v526
          %v531 = vadd.f32 %v523, %v526
          %v532 = vxor.u32 %v528, 2147483648
          %v533 = vxor.u32 %v529, 2147483648
          %v534 = vxor.u32 %v530, 2147483648
          %v535 = vxor.u32 %v531, 2147483648
          %v536 = vmul.f32 %v532, 1.442695
          %v537 = vpow.pop %v536
          %v538 = vmul.f32 %v533, 1.442695
          %v539 = vpow.pop %v538
          %v540 = vmul.f32 %v534, 1.442695
          %v541 = vpow.pop %v540
          %v542 = vmul.f32 %v535, 1.442695
          %v543 = vpow.pop %v542
          %v544 = vadd.f32 %v537, 1.0
          %v545 = vadd.f32 %v539, 1.0
          %v546 = vadd.f32 %v541, 1.0
          %v547 = vadd.f32 %v543, 1.0
          %v548 = vrcp.pop %v544
          %v549 = vmul.f32 %v544, %v548
          %v550 = vsub.f32 1.0, %v549
          %v551 = vmul.f32 %v548, %v550
          %v552 = vadd.f32 %v548, %v551
          %vm553 = vweird.f32 %v544
          %vm554 = vweird.f32 %v548
          %vm555 = vmor %vm553, %vm554
          %v556 = vsel %vm555, %v548, %v552
          %v557 = vand.u32 2147483647, %v544
          %vm558 = vcmp.eq.f32.partialorder %v557, 8.507059e+37
          %v559 = vand.u32 %v544, 2147483648
          %v560 = vor.u32 1.1754944e-38, %v559
          %v561 = vsel %vm558, %v560, %v556
          %v562 = vmul.f32 1.0, %v561
          %v563 = vrcp.pop %v545
          %v564 = vmul.f32 %v545, %v563
          %v565 = vsub.f32 1.0, %v564
          %v566 = vmul.f32 %v563, %v565
          %v567 = vadd.f32 %v563, %v566
          %vm568 = vweird.f32 %v545
          %vm569 = vweird.f32 %v563
          %vm570 = vmor %vm568, %vm569
          %v571 = vsel %vm570, %v563, %v567
          %v572 = vand.u32 2147483647, %v545
          %vm573 = vcmp.eq.f32.partialorder %v572, 8.507059e+37
          %v574 = vand.u32 %v545, 2147483648
          %v575 = vor.u32 1.1754944e-38, %v574
          %v576 = vsel %vm573, %v575, %v571
          %v577 = vmul.f32 1.0, %v576
          %v578 = vrcp.pop %v546
          %v579 = vmul.f32 %v546, %v578
          %v580 = vsub.f32 1.0, %v579
          %v581 = vmul.f32 %v578, %v580
          %v582 = vadd.f32 %v578, %v581
          %vm583 = vweird.f32 %v546
          %vm584 = vweird.f32 %v578
          %vm585 = vmor %vm583, %vm584
          %v586 = vsel %vm585, %v578, %v582
          %v587 = vand.u32 2147483647, %v546
          %vm588 = vcmp.eq.f32.partialorder %v587, 8.507059e+37
          %v589 = vand.u32 %v546, 2147483648
          %v590 = vor.u32 1.1754944e-38, %v589
          %v591 = vsel %vm588, %v590, %v586
          %v592 = vmul.f32 1.0, %v591
          %v593 = vrcp.pop %v547
          %v594 = vmul.f32 %v547, %v593
          %v595 = vsub.f32 1.0, %v594
          %v596 = vmul.f32 %v593, %v595
          %v597 = vadd.f32 %v593, %v596
          %vm598 = vweird.f32 %v547
          %vm599 = vweird.f32 %v593
          %vm600 = vmor %vm598, %vm599
          %v601 = vsel %vm600, %v593, %v597
          %v602 = vand.u32 2147483647, %v547
          %vm603 = vcmp.eq.f32.partialorder %v602, 8.507059e+37
          %v604 = vand.u32 %v547, 2147483648
          %v605 = vor.u32 1.1754944e-38, %v604
          %v606 = vsel %vm603, %v605, %v601
          %v607 = vmul.f32 1.0, %v606
          %v608 = vmul.f32 %v528, %v562
          %v609 = vmul.f32 %v529, %v577
          %v610 = vmul.f32 %v530, %v592
          %v611 = vmul.f32 %v531, %v607
          %v612 = vpack.c.bf16 %v608, %v608
          %v613 = vpack.c.bf16 %v609, %v609
          %v614 = vpack.c.bf16 %v610, %v610
          %v615 = vpack.c.bf16 %v611, %v611
          %616 = vst [vmem:[%s257] sm:$0xf] %v612
          %617 = vst [vmem:[%s257 + $0x4] sm:$0xf] %v613
          %618 = vst [vmem:[%s257 + $0x8] sm:$0xf] %v614
          %619 = vst [vmem:[%s257 + $0xc] sm:$0xf] %v615
        $region81: #{conv_forward.1} parent=68 // pred_fallthru
          _
        %s620 = sand.u32 %s115, 1
        %s621 = sand.u32 %s115, 1
        %s622 = smul.addr %s621, 16
        %s623 = scalar_lea.vmem [#allocation4], %s622
        // Predicated region
        $region82: #{conv_forward.1} parent=68 // pred_check
          %p624 = pneg %p125
        $region83: #{conv_forward.1} parent=68 // pred_check_branch
          %626 = sbr.rel (%p624) target = $region85
        $region84: #{conv_forward.1} parent=68 // pred_region
          %s627 = smul.u32 2, %s19
          %s628 = smul.addr %s20, 2
          %s629 = smul.addr %s627, 32
          %s630 = sadd.s32 %s628, %s629
          %s631 = smul.addr %s630, 4
          %s632 = scalar_lea.vmem %s3, %s631
          // Predicated region
          $region86: #{conv_forward.1} parent=84 // pred_check
            _
          $region87: #{conv_forward.1} parent=84 // pred_check_branch
            %634 = sbr.rel (0) target = $region89
          $region88: #{conv_forward.1} parent=84 // pred_region
            // Predicated region
            $region90: #{conv_forward.1} parent=88 // pred_check
              _
            $region91: #{conv_forward.1} parent=88 // pred_check_branch
              %636 = sbr.rel target = $region93
            $region92: #{conv_forward.1} parent=88 // pred_region
              // Predicated region
              $region105: #{conv_forward.1} parent=92 // pred_check
                _
              $region106: #{conv_forward.1} parent=92 // pred_check_branch
                %658 = sbr.rel (0) target = $region108
              $region107: #{conv_forward.1} parent=92 // pred_region
                loop: start=0, step=1, limit=1
                $region109: #{conv_forward.1} parent=107 // loop_pre_header
                  _
                $region110: #{conv_forward.1} parent=107 // loop_header
                  %s660 = sphi 0, %s664
                  %p661 = scmp.ge.s32.totalorder %s660, 1
                  %s665 = sphi %s623, %s623
                  %s666 = sphi %s632, %s632
                $region111: #{conv_forward.1} parent=107 // loop_header_branch
                  %663 = sbr.rel (%p661) target = $region115
                $region112: #{conv_forward.1} parent=107 // loop_body
                  _
                $region113: #{conv_forward.1} parent=107 // loop_footer
                  %s664 = sadd.s32 1, %s660
                $region114: #{conv_forward.1} parent=107 // loop_footer_branch
                  %659 = sbr.rel target = $region110
                $region115: #{conv_forward.1} parent=107 // loop_exit
                  _
                %s668 = ssub.s32 16, 1
                loop: start=0, step=1, limit=1
                $region116: #{conv_forward.1} parent=107 // loop_pre_header
                  _
                $region117: #{conv_forward.1} parent=107 // loop_header
                  %s670 = sphi 0, %s674
                  %p671 = scmp.ge.s32.totalorder %s670, 1
                  %s675 = sphi %s623, %s623
                  %s676 = sphi %s632, %s632
                $region118: #{conv_forward.1} parent=107 // loop_header_branch
                  %673 = sbr.rel (%p671) target = $region122
                $region119: #{conv_forward.1} parent=107 // loop_body
                  %v677 = vld [vmem:[%s675] sm:%s668]
                  %678 = vst [vmem:[%s676] sm:%s668] %v677
                  %v679 = vld [vmem:[%s675 + $0x4] sm:%s668]
                  %680 = vst [vmem:[%s676 + $0x4] sm:%s668] %v679
                  %v681 = vld [vmem:[%s675 + $0x8] sm:%s668]
                  %682 = vst [vmem:[%s676 + $0x80] sm:%s668] %v681
                  %v683 = vld [vmem:[%s675 + $0xc] sm:%s668]
                  %684 = vst [vmem:[%s676 + $0x84] sm:%s668] %v683
                $region120: #{conv_forward.1} parent=107 // loop_footer
                  %s674 = sadd.s32 1, %s670
                $region121: #{conv_forward.1} parent=107 // loop_footer_branch
                  %669 = sbr.rel target = $region117
                $region122: #{conv_forward.1} parent=107 // loop_exit
                  _
              $region108: #{conv_forward.1} parent=92 // pred_fallthru
                _
            $region93: #{conv_forward.1} parent=88 // pred_fallthru
              _
            // Predicated region
            $region94: #{conv_forward.1} parent=88 // pred_check
              _
            $region95: #{conv_forward.1} parent=88 // pred_check_branch
              %638 = sbr.rel (0) target = $region97
            $region96: #{conv_forward.1} parent=88 // pred_region
              %s640 = ssub.s32 16, 1
              loop: start=0, step=1, limit=1
              $region98: #{conv_forward.1} parent=96 // loop_pre_header
                _
              $region99: #{conv_forward.1} parent=96 // loop_header
                %s642 = sphi 0, %s646
                %p643 = scmp.ge.s32.totalorder %s642, 1
                %s647 = sphi %s623, %s623
                %s648 = sphi %s632, %s632
              $region100: #{conv_forward.1} parent=96 // loop_header_branch
                %645 = sbr.rel (%p643) target = $region104
              $region101: #{conv_forward.1} parent=96 // loop_body
                %v649 = vld [vmem:[%s647] sm:%s640]
                %650 = vst [vmem:[%s648] sm:%s640] %v649
                %v651 = vld [vmem:[%s647 + $0x4] sm:%s640]
                %652 = vst [vmem:[%s648 + $0x4] sm:%s640] %v651
                %v653 = vld [vmem:[%s647 + $0x8] sm:%s640]
                %654 = vst [vmem:[%s648 + $0x80] sm:%s640] %v653
                %v655 = vld [vmem:[%s647 + $0xc] sm:%s640]
                %656 = vst [vmem:[%s648 + $0x84] sm:%s640] %v655
              $region102: #{conv_forward.1} parent=96 // loop_footer
                %s646 = sadd.s32 1, %s642
              $region103: #{conv_forward.1} parent=96 // loop_footer_branch
                %641 = sbr.rel target = $region99
              $region104: #{conv_forward.1} parent=96 // loop_exit
                _
            $region97: #{conv_forward.1} parent=88 // pred_fallthru
              _
          $region89: #{conv_forward.1} parent=84 // pred_fallthru
            _
          %685 = vnop
        $region85: #{conv_forward.1} parent=68 // pred_fallthru
          _
      $region69: #{conv_forward.1} parent=5 // pred_fallthru
        _
      %p686 = scmp.le.s32.totalorder 2, %s9
      // Predicated region
      $region123: #{conv_forward.1} parent=5 // pred_check
        %p687 = pneg %p686
      $region124: #{conv_forward.1} parent=5 // pred_check_branch
        %689 = sbr.rel (%p687) target = $region126
      $region125: #{conv_forward.1} parent=5 // pred_region
        %s690 = ssub.s32 %s9, 2
        // Predicated region
        $region127: #{conv_forward.1} parent=125 // pred_check
          %p691 = pneg %p131
        $region128: #{conv_forward.1} parent=125 // pred_check_branch
          %693 = sbr.rel (%p691) target = $region130
        $region129: #{conv_forward.1} parent=125 // pred_region
          %s694 = sand.u32 %s116, 1
          %s695 = sand.u32 %s116, 1
          %s696 = smul.addr %s695, 16
          %s697 = scalar_lea.vmem [#allocation4], %s696
        $region130: #{conv_forward.1} parent=125 // pred_fallthru
          _
      $region126: #{conv_forward.1} parent=5 // pred_fallthru
        _
    $region6: #{conv_forward.1} parent=1 // loop_footer
      %s13 = sadd.s32 1, %s9
    $region7: #{conv_forward.1} parent=1 // loop_footer_branch
      %8 = sbr.rel target = $region3
    $region8: #{conv_forward.1} parent=1 // loop_exit
      _

</llo_original>
